<compile_context>
chip_gen: v7x
topology: tpu7x:2x2x1
jax: 0.10.0
libtpu: 0.0.40
codegen_flags: <defaults>
</compile_context>

<pallas_src>
import functools

import jax
import jax.numpy as jnp
from jax import lax
from jax.experimental import pallas as pl
from jax.experimental.pallas import tpu as pltpu


def _fm_linear_kernel(x_sref, w_ref, b_ref, o_ref, *, tb, num_fields):
    """grid = (ceil(B/TB),).

    x_sref : SMEM (B_pad*F,) int32 flattened indices (scalar prefetch)
    w_ref  : VMEM (V, D) embedding table, resident across all grid steps
    b_ref  : VMEM (1, D) bias row, resident
    o_ref  : VMEM (TB, D) output tile for this batch tile
    """
    tile = pl.program_id(0)
    bias_row = b_ref[...]  # (1, D) -- hoisted out of the loops

    def row_body(r, carry):
        base = (tile * tb + r) * num_fields

        def field_body(f, acc):
            idx = x_sref[base + f]                 # scalar read from SMEM
            return acc + w_ref[pl.ds(idx, 1), :]   # dynamic (1, D) gather from VMEM

        # In-register accumulation over fields; unrolled (F is small).
        row = lax.fori_loop(0, num_fields, field_body, bias_row, unroll=True)
        o_ref[pl.ds(r, 1), :] = row.astype(o_ref.dtype)  # one store per output row
        return carry

    lax.fori_loop(0, tb, row_body, 0)


def fm_linear_forward(x, weight, bias, *, tb=128):
    """x: (B, F) int indices; weight: (V, D); bias: (D,) -> (B, D)."""
    B, F = x.shape
    V, D = weight.shape

    # torch.nn.Embedding errors on out-of-range indices; clamp defensively so
    # the in-kernel dynamic gather can never read outside the table.
    x_idx = jnp.clip(x.astype(jnp.int32), 0, V - 1)

    # Pad the batch to a multiple of the tile so every in-kernel index is
    # in-bounds (padded rows gather row 0 and are sliced off below).
    num_tiles = pl.cdiv(B, tb)
    b_pad = num_tiles * tb
    if b_pad != B:
        x_idx = jnp.pad(x_idx, ((0, b_pad - B), (0, 0)))

    # Flatten to 1-D for the SMEM prefetch operand (avoids 2-D SMEM padding).
    x_flat = x_idx.reshape(b_pad * F)

    bias2 = bias.reshape(1, D).astype(jnp.float32)

    table_bytes = V * D * jnp.dtype(weight.dtype).itemsize
    # Resident-table variant; keep the scoped-VMEM request comfortably under
    # v7x's 64 MiB physical per-TC VMEM.
    vmem_limit = int(min(max(32 << 20, table_bytes + (8 << 20)), 56 << 20))

    kernel = functools.partial(_fm_linear_kernel, tb=tb, num_fields=F)

    grid_spec = pltpu.PrefetchScalarGridSpec(
        num_scalar_prefetch=1,  # x_flat lands in SMEM
        grid=(num_tiles,),
        in_specs=[
            # Whole table, same block every step -> loaded once, stays resident.
            pl.BlockSpec((V, D), lambda i, xs: (0, 0)),
            # Bias row, resident.
            pl.BlockSpec((1, D), lambda i, xs: (0, 0)),
        ],
        out_specs=pl.BlockSpec((tb, D), lambda i, xs: (i, 0)),
    )

    cost = pl.CostEstimate(
        flops=b_pad * F * D,  # adds only
        transcendentals=0,
        bytes_accessed=b_pad * F * 4 + table_bytes + b_pad * D * 4,
    )

    out = pl.pallas_call(
        kernel,
        out_shape=jax.ShapeDtypeStruct((b_pad, D), weight.dtype),
        grid_spec=grid_spec,
        compiler_params=pltpu.CompilerParams(
            dimension_semantics=("parallel",),
            vmem_limit_bytes=vmem_limit,
        ),
        cost_estimate=cost,
    )(x_flat, weight, bias2)

    return out[:B]


if __name__ == "__main__":
    # Small, deterministic setup consistent with the module:
    #   Embedding(vocabulary_size, output_dim=1), x of shape (batch, num_fields)
    vocabulary_size = 128
    output_dim = 1
    batch = 8
    num_fields = 8

    key = jax.random.PRNGKey(0)
    k_w, k_b, k_x = jax.random.split(key, 3)

    weight = jax.random.normal(k_w, (vocabulary_size, output_dim), dtype=jnp.float32)
    # Module initializes bias to zeros; use a nonzero bias here to exercise the add.
    bias = 0.1 * jax.random.normal(k_b, (output_dim,), dtype=jnp.float32)

    x = jax.random.randint(
        k_x, (batch, num_fields), 0, vocabulary_size, dtype=jnp.int32
    )

    out = fm_linear_forward(x, weight, bias)
    out = jax.block_until_ready(out)

    # Pure-JAX reference for correctness
    ref = jnp.sum(weight[x], axis=1) + bias
    assert out.shape == (batch, output_dim)
    assert jnp.allclose(out, ref, atol=1e-5, rtol=1e-5), (out, ref)

    print("KERNEL_OK")
</pallas_src>

<mosaic_0001>
module attributes {stable_mosaic.version = 11 : i64} {
  func.func @_fm_linear_kernel(%arg0: i32, %arg1: memref<1024xi32, #tpu.memory_space<smem>>, %arg2: memref<128x1xf32, #tpu.memory_space<vmem>>, %arg3: memref<1x1xf32, #tpu.memory_space<vmem>>, %arg4: memref<128x1xf32, #tpu.memory_space<vmem>>) attributes {dimension_semantics = [#tpu.dimension_semantics<parallel>], iteration_bounds = array<i64: 1>, scalar_prefetch = 1 : i64, scratch_operands = 0 : i64, tpu.core_type = #tpu.core_type<tc>, window_params = [{pipeline_mode = #tpu.pipeline_mode<synchronous>, transform_indices = @transform_0, window_bounds = array<i64: 128, 1>}, {pipeline_mode = #tpu.pipeline_mode<synchronous>, transform_indices = @transform_1, window_bounds = array<i64: 1, 1>}, {transform_indices = @transform_2, window_bounds = array<i64: 128, 1>}]} {
    %c0 = arith.constant 0 : index
    %c0_0 = arith.constant 0 : index
    %0 = vector.load %arg3[%c0, %c0_0] : memref<1x1xf32, #tpu.memory_space<vmem>>, vector<1x1xf32>
    %c0_i32 = arith.constant 0 : i32
    %c128_i32 = arith.constant 128 : i32
    %1 = arith.addi %c0_i32, %c128_i32 : i32
    %c1_i32 = arith.constant 1 : i32
    scf.for %arg5 = %c0_i32 to %1 step %c1_i32  : i32 {
      %c128_i32_2 = arith.constant 128 : i32
      %2 = arith.muli %arg0, %c128_i32_2 : i32
      %3 = arith.addi %2, %arg5 : i32
      %c8_i32 = arith.constant 8 : i32
      %4 = arith.muli %3, %c8_i32 : i32
      %c0_i32_3 = arith.constant 0 : i32
      %5 = arith.addi %4, %c0_i32_3 : i32
      %6 = arith.index_cast %5 : i32 to index
      %7 = memref.load %arg1[%6] : memref<1024xi32, #tpu.memory_space<smem>>
      %8 = arith.index_cast %7 : i32 to index
      %c0_4 = arith.constant 0 : index
      %9 = vector.load %arg2[%8, %c0_4] : memref<128x1xf32, #tpu.memory_space<vmem>>, vector<1x1xf32>
      %10 = arith.addf %0, %9 : vector<1x1xf32>
      %c1_i32_5 = arith.constant 1 : i32
      %11 = arith.addi %4, %c1_i32_5 : i32
      %12 = arith.index_cast %11 : i32 to index
      %13 = memref.load %arg1[%12] : memref<1024xi32, #tpu.memory_space<smem>>
      %14 = arith.index_cast %13 : i32 to index
      %c0_6 = arith.constant 0 : index
      %15 = vector.load %arg2[%14, %c0_6] : memref<128x1xf32, #tpu.memory_space<vmem>>, vector<1x1xf32>
      %16 = arith.addf %10, %15 : vector<1x1xf32>
      %c2_i32 = arith.constant 2 : i32
      %17 = arith.addi %4, %c2_i32 : i32
      %18 = arith.index_cast %17 : i32 to index
      %19 = memref.load %arg1[%18] : memref<1024xi32, #tpu.memory_space<smem>>
      %20 = arith.index_cast %19 : i32 to index
      %c0_7 = arith.constant 0 : index
      %21 = vector.load %arg2[%20, %c0_7] : memref<128x1xf32, #tpu.memory_space<vmem>>, vector<1x1xf32>
      %22 = arith.addf %16, %21 : vector<1x1xf32>
      %c3_i32 = arith.constant 3 : i32
      %23 = arith.addi %4, %c3_i32 : i32
      %24 = arith.index_cast %23 : i32 to index
      %25 = memref.load %arg1[%24] : memref<1024xi32, #tpu.memory_space<smem>>
      %26 = arith.index_cast %25 : i32 to index
      %c0_8 = arith.constant 0 : index
      %27 = vector.load %arg2[%26, %c0_8] : memref<128x1xf32, #tpu.memory_space<vmem>>, vector<1x1xf32>
      %28 = arith.addf %22, %27 : vector<1x1xf32>
      %c4_i32 = arith.constant 4 : i32
      %29 = arith.addi %4, %c4_i32 : i32
      %30 = arith.index_cast %29 : i32 to index
      %31 = memref.load %arg1[%30] : memref<1024xi32, #tpu.memory_space<smem>>
      %32 = arith.index_cast %31 : i32 to index
      %c0_9 = arith.constant 0 : index
      %33 = vector.load %arg2[%32, %c0_9] : memref<128x1xf32, #tpu.memory_space<vmem>>, vector<1x1xf32>
      %34 = arith.addf %28, %33 : vector<1x1xf32>
      %c5_i32 = arith.constant 5 : i32
      %35 = arith.addi %4, %c5_i32 : i32
      %36 = arith.index_cast %35 : i32 to index
      %37 = memref.load %arg1[%36] : memref<1024xi32, #tpu.memory_space<smem>>
      %38 = arith.index_cast %37 : i32 to index
      %c0_10 = arith.constant 0 : index
      %39 = vector.load %arg2[%38, %c0_10] : memref<128x1xf32, #tpu.memory_space<vmem>>, vector<1x1xf32>
      %40 = arith.addf %34, %39 : vector<1x1xf32>
      %c6_i32 = arith.constant 6 : i32
      %41 = arith.addi %4, %c6_i32 : i32
      %42 = arith.index_cast %41 : i32 to index
      %43 = memref.load %arg1[%42] : memref<1024xi32, #tpu.memory_space<smem>>
      %44 = arith.index_cast %43 : i32 to index
      %c0_11 = arith.constant 0 : index
      %45 = vector.load %arg2[%44, %c0_11] : memref<128x1xf32, #tpu.memory_space<vmem>>, vector<1x1xf32>
      %46 = arith.addf %40, %45 : vector<1x1xf32>
      %c7_i32 = arith.constant 7 : i32
      %47 = arith.addi %4, %c7_i32 : i32
      %48 = arith.index_cast %47 : i32 to index
      %49 = memref.load %arg1[%48] : memref<1024xi32, #tpu.memory_space<smem>>
      %50 = arith.index_cast %49 : i32 to index
      %c0_12 = arith.constant 0 : index
      %51 = vector.load %arg2[%50, %c0_12] : memref<128x1xf32, #tpu.memory_space<vmem>>, vector<1x1xf32>
      %52 = arith.addf %46, %51 : vector<1x1xf32>
      %c8_i32_13 = arith.constant 8 : i32
      %53 = arith.index_cast %arg5 : i32 to index
      %c0_14 = arith.constant 0 : index
      %54 = vector.load %arg4[%53, %c0_14] : memref<128x1xf32, #tpu.memory_space<vmem>>, vector<1x1xf32>
      tpu.vector_store %arg4[%53, %c0_14], %52 {strides = array<i32>} : memref<128x1xf32, #tpu.memory_space<vmem>>, vector<1x1xf32>,
    }
    %c128_i32_1 = arith.constant 128 : i32
    return
  }
  func.func @transform_0(%arg0: i32, %arg1: memref<1024xi32, #tpu.memory_space<smem>>) -> (i32, i32) {
    %c0_i32 = arith.constant 0 : i32
    %c0_i32_0 = arith.constant 0 : i32
    %c0_i32_1 = arith.constant 0 : i32
    return %c0_i32, %c0_i32_0 : i32, i32
  }
  func.func @transform_1(%arg0: i32, %arg1: memref<1024xi32, #tpu.memory_space<smem>>) -> (i32, i32) {
    %c0_i32 = arith.constant 0 : i32
    %c0_i32_0 = arith.constant 0 : i32
    %c0_i32_1 = arith.constant 0 : i32
    return %c0_i32, %c0_i32_0 : i32, i32
  }
  func.func @transform_2(%arg0: i32, %arg1: memref<1024xi32, #tpu.memory_space<smem>>) -> (i32, i32) {
    %c0_i32 = arith.constant 0 : i32
    %c0_i32_0 = arith.constant 0 : i32
    return %arg0, %c0_i32 : i32, i32
  }
}

</mosaic_0001>

<llo_original>
// kernel: tpu_custom_call.1
$region0: #{tpu_custom_call.1}
  #allocation0 [shape = 'u32[]', space=smem, size = 0x4, offset = 0x4, fixed_abs, tag = 'smem constant byte address 0x4 - core index']
  #allocation1 [shape = 'u32[144,128]{1,0:T(1,128)}', space=vmem, size = 0x12000, scoped, tag = 'internal scratch']
  #allocation2 [shape = 's32[1]{0}', space=sflag, size = 0x4, scoped, tag = 'scoped memory for tpu_custom_call.1']
  #allocation3 [shape = 'u8[4096]{0}', space=smem, size = 0x1000, scoped, tag = 'prefetched SMEM operand 0']
  #allocation4 [shape = 'f32[1,1]{1,0:T(1,128)S(1)}', space=vmem, size = 0x200, scoped, tag = 'scoped memory for tpu_custom_call.1']
  %s0 = inlined_call_operand.vmem [shape: s32[1024], index: 0, kind: input, shape index: {}]
  %s1 = inlined_call_operand.vmem [shape: f32[128,1], index: 1, kind: input, shape index: {}]
  %s2 = inlined_call_operand.<no memory space> [shape: f32[1,1], index: 2, kind: input, shape index: {}]
  %s3 = inlined_call_operand.vmem [shape: f32[128,1], index: 3, kind: output, shape index: {}]
  %s4 = sld [smem:[#allocation0]]
  $region25: #{tpu_custom_call.1} parent=0
    _
  %s6 = ssub.s32 1, %s4
  %s7 = scalar_select 0, %s6, %s4
  %s8 = sshll.u32 %s0, 4
  %s9 = int_to_ptr.vmem [resolvable:$true] %s8
  %11 = dma.vmem_to_smem %s9, 128, [#allocation3], [#allocation2]
  %v12 = vstv %s2
  %13 = vst [vmem:[#allocation4] sm:$0x1] %v12
  %14 = dma.done [#allocation2], 128
  %15 = sfence
  // Predicated region
  $region2: #{tpu_custom_call.1} parent=0 // pred_check
    _
  $region3: #{tpu_custom_call.1} parent=0 // pred_check_branch
    %17 = sbr.rel (0) target = $region5
  $region4: #{tpu_custom_call.1} parent=0 // pred_region
    _
  $region5: #{tpu_custom_call.1} parent=0 // pred_fallthru
    _
  // Predicated region
  $region6: #{tpu_custom_call.1} parent=0 // pred_check
    _
  $region7: #{tpu_custom_call.1} parent=0 // pred_check_branch
    %19 = sbr.rel (0) target = $region9
  $region8: #{tpu_custom_call.1} parent=0 // pred_region
    _
  $region9: #{tpu_custom_call.1} parent=0 // pred_fallthru
    _
  %v20 = vld [vmem:[#allocation4] sm:$0x1]
  loop: start=0, step=1, limit=128
  $region10: #{tpu_custom_call.1} parent=0 // loop_pre_header
    _
  $region11: #{tpu_custom_call.1} parent=0 // loop_header
    %s22 = sphi 0, %s26
    %p23 = scmp.ge.s32.totalorder %s22, 128
  $region12: #{tpu_custom_call.1} parent=0 // loop_header_branch
    %25 = sbr.rel (%p23) target = $region16
  $region13: #{tpu_custom_call.1} parent=0 // loop_body
    %s27 = smul.u32 0, 128
    %s28 = sadd.s32 %s27, %s22
    %s29 = smul.u32 %s28, 8
    %s30 = sld [smem:[#allocation3 + %s29]]
    %s31 = scalar_lea.vmem %s1, %s30
    %v32 = vld [vmem:[%s31] sm:$0x1]
    %v33 = vadd.f32 %v20, %v32
    %s34 = sadd.s32 %s29, 1
    %s35 = sld [smem:[#allocation3 + %s34]]
    %s36 = scalar_lea.vmem %s1, %s35
    %v37 = vld [vmem:[%s36] sm:$0x1]
    %v38 = vadd.f32 %v33, %v37
    %s39 = sadd.s32 %s29, 2
    %s40 = sld [smem:[#allocation3 + %s39]]
    %s41 = scalar_lea.vmem %s1, %s40
    %v42 = vld [vmem:[%s41] sm:$0x1]
    %v43 = vadd.f32 %v38, %v42
    %s44 = sadd.s32 %s29, 3
    %s45 = sld [smem:[#allocation3 + %s44]]
    %s46 = scalar_lea.vmem %s1, %s45
    %v47 = vld [vmem:[%s46] sm:$0x1]
    %v48 = vadd.f32 %v43, %v47
    %s49 = sadd.s32 %s29, 4
    %s50 = sld [smem:[#allocation3 + %s49]]
    %s51 = scalar_lea.vmem %s1, %s50
    %v52 = vld [vmem:[%s51] sm:$0x1]
    %v53 = vadd.f32 %v48, %v52
    %s54 = sadd.s32 %s29, 5
    %s55 = sld [smem:[#allocation3 + %s54]]
    %s56 = scalar_lea.vmem %s1, %s55
    %v57 = vld [vmem:[%s56] sm:$0x1]
    %v58 = vadd.f32 %v53, %v57
    %s59 = sadd.s32 %s29, 6
    %s60 = sld [smem:[#allocation3 + %s59]]
    %s61 = scalar_lea.vmem %s1, %s60
    %v62 = vld [vmem:[%s61] sm:$0x1]
    %v63 = vadd.f32 %v58, %v62
    %s64 = sadd.s32 %s29, 7
    %s65 = sld [smem:[#allocation3 + %s64]]
    %s66 = scalar_lea.vmem %s1, %s65
    %v67 = vld [vmem:[%s66] sm:$0x1]
    %v68 = vadd.f32 %v63, %v67
    %s69 = scalar_lea.vmem %s3, %s22
    %vm70 = vcmask 0
    %71 = vst.msk [vmem:[%s69] sm:$0x1] %vm70, %v68
  $region14: #{tpu_custom_call.1} parent=0 // loop_footer
    %s26 = sadd.s32 1, %s22
  $region15: #{tpu_custom_call.1} parent=0 // loop_footer_branch
    %21 = sbr.rel target = $region11
  $region16: #{tpu_custom_call.1} parent=0 // loop_exit
    _
  // Predicated region
  $region17: #{tpu_custom_call.1} parent=0 // pred_check
    _
  $region18: #{tpu_custom_call.1} parent=0 // pred_check_branch
    %73 = sbr.rel (0) target = $region20
  $region19: #{tpu_custom_call.1} parent=0 // pred_region
    _
  $region20: #{tpu_custom_call.1} parent=0 // pred_fallthru
    _
  // Predicated region
  $region21: #{tpu_custom_call.1} parent=0 // pred_check
    _
  $region22: #{tpu_custom_call.1} parent=0 // pred_check_branch
    %75 = sbr.rel (0) target = $region24
  $region23: #{tpu_custom_call.1} parent=0 // pred_region
    _
  $region24: #{tpu_custom_call.1} parent=0 // pred_fallthru
    _

</llo_original>
